<compile_context>
chip_gen: v5e
topology: v5e:2x2
jax: 0.10.0
libtpu: 0.0.40
codegen_flags: <defaults>
</compile_context>

<pallas_src>
import functools

import jax
import jax.numpy as jnp
from jax import lax
from jax.experimental import pallas as pl
from jax.experimental.pallas import tpu as pltpu


def _round_up(x: int, m: int) -> int:
    return ((x + m - 1) // m) * m


def _mlp_kernel(x_ref, w_in_ref, b_in_ref, *rest, n_hidden_mm: int):
    """Fused MLP forward for one batch tile.

    x_ref:     (tm, Dp)   bf16 input tile (lane-padded)
    w_in_ref:  (Dp, Hp)   bf16 first-layer weight
    b_in_ref:  (1, Hp)    f32 bias
    [if n_hidden_mm > 0]
      w_hid_ref: (Lh, Hp, Hp) bf16 stacked hidden->hidden weights
      b_hid_ref: (Lh, 1, Hp)  f32 biases
    w_out_ref: (Hp, Cp)   bf16 output-layer weight
    b_out_ref: (1, Cp)    f32 bias
    o_ref:     (tm, Cp)   f32 logits tile
    h_ref:     (tm, Hp)   bf16 VMEM scratch holding the running activation
    """
    if n_hidden_mm > 0:
        w_hid_ref, b_hid_ref, w_out_ref, b_out_ref, o_ref, h_ref = rest
    else:
        w_out_ref, b_out_ref, o_ref, h_ref = rest
        w_hid_ref = b_hid_ref = None

    # Layer 0: bf16 x @ bf16 W_in on the MXU with f32 accumulation;
    # bias + ReLU in f32; store running activation as bf16.
    h0 = jnp.dot(x_ref[...], w_in_ref[...],
                 preferred_element_type=jnp.float32) + b_in_ref[...]
    h_ref[...] = jnp.maximum(h0, 0.0).astype(jnp.bfloat16)

    if n_hidden_mm > 0:
        def body(l, carry):
            y = jnp.dot(h_ref[...], w_hid_ref[l],
                        preferred_element_type=jnp.float32) + b_hid_ref[l]
            h_ref[...] = jnp.maximum(y, 0.0).astype(jnp.bfloat16)
            return carry

        # Full unroll only for shallow stacks; deep stacks use a rolled loop
        # to avoid code bloat / vreg pressure.
        lax.fori_loop(0, n_hidden_mm, body, 0, unroll=(n_hidden_mm <= 8))

    # Output layer (no ReLU), logits in f32.
    logits = jnp.dot(h_ref[...], w_out_ref[...],
                     preferred_element_type=jnp.float32) + b_out_ref[...]
    o_ref[...] = logits.astype(o_ref.dtype)


def network_forward(params, x, *, batch_tile: int = 256) -> jax.Array:
    """Full MLP forward as ONE fused Pallas kernel (grid over batch tiles)."""
    batch, input_size = x.shape
    hidden_units = params["w_in"].shape[1]
    num_classes = params["w_out"].shape[1]
    n_hidden_mm = int(params["w_hid"].shape[0])  # number of H->H layers (may be 0)

    # Lane-dense padding (multiples of 128 on feature dims, >=16 rows for bf16).
    dp = _round_up(input_size, 128)
    hp = _round_up(hidden_units, 128)
    cp = _round_up(num_classes, 128)

    tm = min(batch_tile, _round_up(batch, 16))
    bp = _round_up(batch, tm)
    # v7x has two TensorCores: make sure the "parallel" batch axis has >=2
    # grid steps whenever the batch is large enough to split.
    if bp // tm < 2 and bp >= 32:
        tm = max(16, _round_up(bp // 2, 16))
        bp = _round_up(batch, tm)

    bf16, f32 = jnp.bfloat16, jnp.float32

    # Pre-cast matmul operands to bf16 in the wrapper; biases stay f32.
    x_p = jnp.pad(x.astype(bf16), ((0, bp - batch), (0, dp - input_size)))
    w_in_p = jnp.pad(params["w_in"].astype(bf16),
                     ((0, dp - input_size), (0, hp - hidden_units)))
    b_in_p = jnp.pad(params["b_in"].astype(f32),
                     ((0, hp - hidden_units),)).reshape(1, hp)
    w_out_p = jnp.pad(params["w_out"].astype(bf16),
                      ((0, hp - hidden_units), (0, cp - num_classes)))
    b_out_p = jnp.pad(params["b_out"].astype(f32),
                      ((0, cp - num_classes),)).reshape(1, cp)

    args = [x_p, w_in_p, b_in_p]
    if n_hidden_mm > 0:
        w_hid_p = jnp.pad(
            params["w_hid"].astype(bf16),
            ((0, 0), (0, hp - hidden_units), (0, hp - hidden_units)))
        b_hid_p = jnp.pad(
            params["b_hid"].astype(f32),
            ((0, 0), (0, hp - hidden_units))).reshape(n_hidden_mm, 1, hp)
        args += [w_hid_p, b_hid_p]
    args += [w_out_p, b_out_p]

    # Explicit VMEM budget: double-buffered x / out tiles, single-buffered
    # weights, plus the bf16 activation scratch (biases padded to 8 sublanes).
    vmem_bytes = (
        2 * tm * dp * 2                      # x tile (bf16) x2
        + 2 * tm * cp * 4                    # out tile (f32) x2
        + dp * hp * 2 + 8 * hp * 4           # W_in + b_in
        + hp * cp * 2 + 8 * cp * 4           # W_out + b_out
        + tm * hp * 2                        # activation scratch (bf16)
    )
    if n_hidden_mm > 0:
        vmem_bytes += n_hidden_mm * hp * hp * 2 + n_hidden_mm * 8 * hp * 4
    vmem_limit = max(16 << 20, min(int(vmem_bytes * 1.5) + (4 << 20), 100 << 20))

    kernel = functools.partial(_mlp_kernel, n_hidden_mm=n_hidden_mm)

    def build_call(single_buffer_weights: bool):
        # Weight / bias blocks have constant index maps -> single buffering.
        wkw = dict(pipeline_mode=pl.Buffered(1)) if single_buffer_weights else {}
        in_specs = [
            pl.BlockSpec((tm, dp), lambda i: (i, 0)),                # x tile
            pl.BlockSpec((dp, hp), lambda i: (0, 0), **wkw),         # W_in
            pl.BlockSpec((1, hp), lambda i: (0, 0), **wkw),          # b_in
        ]
        if n_hidden_mm > 0:
            in_specs += [
                pl.BlockSpec((n_hidden_mm, hp, hp), lambda i: (0, 0, 0), **wkw),
                pl.BlockSpec((n_hidden_mm, 1, hp), lambda i: (0, 0, 0), **wkw),
            ]
        in_specs += [
            pl.BlockSpec((hp, cp), lambda i: (0, 0), **wkw),          # W_out
            pl.BlockSpec((1, cp), lambda i: (0, 0), **wkw),           # b_out
        ]
        return pl.pallas_call(
            kernel,
            out_shape=jax.ShapeDtypeStruct((bp, cp), jnp.float32),
            grid_spec=pltpu.PrefetchScalarGridSpec(
                num_scalar_prefetch=0,
                grid=(bp // tm,),
                in_specs=in_specs,
                out_specs=pl.BlockSpec((tm, cp), lambda i: (i, 0)),
                scratch_shapes=[pltpu.VMEM((tm, hp), jnp.bfloat16)],
            ),
            compiler_params=pltpu.CompilerParams(
                dimension_semantics=("parallel",),  # batch tiles across TCs
                vmem_limit_bytes=vmem_limit,
            ),
        )

    try:
        out_p = build_call(True)(*args)
    except Exception:
        # Fallback for JAX builds where pipeline_mode=pl.Buffered(1) is not
        # supported on pallas_call BlockSpecs: default (double) buffering.
        out_p = build_call(False)(*args)

    return out_p[:batch, :num_classes]


def init_network_params(key, input_size, hidden_layers, hidden_units, num_classes):
    """nn.Linear-style init (U(-1/sqrt(fan_in), 1/sqrt(fan_in))) for the implied MLP."""
    assert hidden_layers >= 1

    def _linear_init(k, fan_in, fan_out):
        wk, bk = jax.random.split(k)
        scale = 1.0 / float(fan_in) ** 0.5
        w = jax.random.uniform(wk, (fan_in, fan_out), jnp.float32, -scale, scale)
        b = jax.random.uniform(bk, (fan_out,), jnp.float32, -scale, scale)
        return w, b

    keys = jax.random.split(key, hidden_layers + 1)
    w_in, b_in = _linear_init(keys[0], input_size, hidden_units)

    w_hid, b_hid = [], []
    for l in range(hidden_layers - 1):
        w, b = _linear_init(keys[1 + l], hidden_units, hidden_units)
        w_hid.append(w)
        b_hid.append(b)
    if w_hid:
        w_hid = jnp.stack(w_hid)
        b_hid = jnp.stack(b_hid)
    else:
        w_hid = jnp.zeros((0, hidden_units, hidden_units), jnp.float32)
        b_hid = jnp.zeros((0, hidden_units), jnp.float32)

    w_out, b_out = _linear_init(keys[hidden_layers], hidden_units, num_classes)
    return dict(w_in=w_in, b_in=b_in, w_hid=w_hid, b_hid=b_hid,
                w_out=w_out, b_out=b_out)


def _ref_forward(params, x):
    """Pure-JAX reference with the same bf16-operand / f32-accumulate matmuls."""
    def lin(h, w, b):
        return jnp.dot(h.astype(jnp.bfloat16), w.astype(jnp.bfloat16),
                       preferred_element_type=jnp.float32) + b

    h = jnp.maximum(lin(x, params["w_in"], params["b_in"]), 0.0)
    for l in range(params["w_hid"].shape[0]):
        h = jnp.maximum(lin(h, params["w_hid"][l], params["b_hid"][l]), 0.0)
    return lin(h, params["w_out"], params["b_out"])


if __name__ == "__main__":
    key = jax.random.PRNGKey(0)

    # (batch, input_size, hidden_layers, hidden_units, num_classes)
    configs = [
        (8, 32, 2, 32, 10),   # one H->H layer (unrolled path)
        (8, 32, 1, 32, 10),   # no H->H layers (hidden-weight block elided)
        (8, 32, 10, 32, 10),  # deep stack -> rolled fori_loop path
    ]
    for cfg in configs:
        batch, input_size, hidden_layers, hidden_units, num_classes = cfg
        key, xk, pk = jax.random.split(key, 3)
        x = jax.random.normal(xk, (batch, input_size), dtype=jnp.float32)
        params = init_network_params(
            pk, input_size, hidden_layers, hidden_units, num_classes)

        logits = jax.block_until_ready(network_forward(params, x))
        ref = _ref_forward(params, x)

        assert logits.shape == (batch, num_classes)
        assert jnp.allclose(logits, ref, atol=2e-3, rtol=2e-3), (
            cfg, float(jnp.max(jnp.abs(logits - ref))))

    print("KERNEL_OK")
</pallas_src>

<mosaic_0001>
module attributes {stable_mosaic.version = 11 : i64} {
  func.func @_mlp_kernel(%arg0: i32, %arg1: memref<16x128xbf16, #tpu.memory_space<vmem>>, %arg2: memref<128x128xbf16, #tpu.memory_space<vmem>>, %arg3: memref<1x128xf32, #tpu.memory_space<vmem>>, %arg4: memref<1x128x128xbf16, #tpu.memory_space<vmem>>, %arg5: memref<1x1x128xf32, #tpu.memory_space<vmem>>, %arg6: memref<128x128xbf16, #tpu.memory_space<vmem>>, %arg7: memref<1x128xf32, #tpu.memory_space<vmem>>, %arg8: memref<16x128xf32, #tpu.memory_space<vmem>>, %arg9: memref<16x128xbf16, #tpu.memory_space<vmem>>) attributes {dimension_semantics = [#tpu.dimension_semantics<parallel>], iteration_bounds = array<i64: 1>, scalar_prefetch = 0 : i64, scratch_operands = 1 : i64, tpu.core_type = #tpu.core_type<tc>, window_params = [{transform_indices = @transform_0, window_bounds = array<i64: 16, 128>}, {pipeline_mode = #tpu.pipeline_mode<synchronous>, transform_indices = @transform_1, window_bounds = array<i64: 128, 128>}, {pipeline_mode = #tpu.pipeline_mode<synchronous>, transform_indices = @transform_2, window_bounds = array<i64: 1, 128>}, {pipeline_mode = #tpu.pipeline_mode<synchronous>, transform_indices = @transform_3, window_bounds = array<i64: 1, 128, 128>}, {pipeline_mode = #tpu.pipeline_mode<synchronous>, transform_indices = @transform_4, window_bounds = array<i64: 1, 1, 128>}, {pipeline_mode = #tpu.pipeline_mode<synchronous>, transform_indices = @transform_5, window_bounds = array<i64: 128, 128>}, {pipeline_mode = #tpu.pipeline_mode<synchronous>, transform_indices = @transform_6, window_bounds = array<i64: 1, 128>}, {transform_indices = @transform_7, window_bounds = array<i64: 16, 128>}]} {
    %c0 = arith.constant 0 : index
    %c0_0 = arith.constant 0 : index
    %0 = vector.load %arg1[%c0, %c0_0] : memref<16x128xbf16, #tpu.memory_space<vmem>>, vector<16x128xbf16>
    %c0_1 = arith.constant 0 : index
    %c0_2 = arith.constant 0 : index
    %1 = vector.load %arg2[%c0_1, %c0_2] : memref<128x128xbf16, #tpu.memory_space<vmem>>, vector<128x128xbf16>
    %cst = arith.constant dense<0.000000e+00> : vector<16x128xf32>
    %2 = tpu.matmul %0, %1, %cst {dimension_numbers = #tpu.dot_dimension_numbers<[1], [0], [0], [1], [0, 0, 1, 1], [], []>} : vector<16x128xbf16>, vector<128x128xbf16>, vector<16x128xf32> -> vector<16x128xf32>
    %c0_3 = arith.constant 0 : index
    %c0_4 = arith.constant 0 : index
    %3 = vector.load %arg3[%c0_3, %c0_4] : memref<1x128xf32, #tpu.memory_space<vmem>>, vector<1x128xf32>
    %4 = vector.broadcast %3 : vector<1x128xf32> to vector<16x128xf32>
    %5 = arith.addf %2, %4 : vector<16x128xf32>
    %cst_5 = arith.constant 0.000000e+00 : f32
    %6 = vector.broadcast %cst_5 : f32 to vector<16x128xf32>
    %7 = arith.maximumf %5, %6 : vector<16x128xf32>
    %8 = arith.truncf %7 : vector<16x128xf32> to vector<16x128xbf16>
    %c0_6 = arith.constant 0 : index
    %c0_7 = arith.constant 0 : index
    %9 = vector.load %arg9[%c0_6, %c0_7] : memref<16x128xbf16, #tpu.memory_space<vmem>>, vector<16x128xbf16>
    tpu.vector_store %arg9[%c0_6, %c0_7], %8 {strides = array<i32>} : memref<16x128xbf16, #tpu.memory_space<vmem>>, vector<16x128xbf16>,
    %c0_i32 = arith.constant 0 : i32
    %c0_8 = arith.constant 0 : index
    %c0_9 = arith.constant 0 : index
    %10 = vector.load %arg9[%c0_8, %c0_9] : memref<16x128xbf16, #tpu.memory_space<vmem>>, vector<16x128xbf16>
    %11 = arith.index_cast %c0_i32 : i32 to index
    %c0_10 = arith.constant 0 : index
    %c0_11 = arith.constant 0 : index
    %12 = vector.load %arg4[%11, %c0_10, %c0_11] : memref<1x128x128xbf16, #tpu.memory_space<vmem>>, vector<1x128x128xbf16>
    %13 = vector.shape_cast %12 : vector<1x128x128xbf16> to vector<128x128xbf16>
    %cst_12 = arith.constant dense<0.000000e+00> : vector<16x128xf32>
    %14 = tpu.matmul %10, %13, %cst_12 {dimension_numbers = #tpu.dot_dimension_numbers<[1], [0], [0], [1], [0, 0, 1, 1], [], []>} : vector<16x128xbf16>, vector<128x128xbf16>, vector<16x128xf32> -> vector<16x128xf32>
    %15 = arith.index_cast %c0_i32 : i32 to index
    %c0_13 = arith.constant 0 : index
    %c0_14 = arith.constant 0 : index
    %16 = vector.load %arg5[%15, %c0_13, %c0_14] : memref<1x1x128xf32, #tpu.memory_space<vmem>>, vector<1x1x128xf32>
    %17 = vector.shape_cast %16 : vector<1x1x128xf32> to vector<1x128xf32>
    %18 = vector.broadcast %17 : vector<1x128xf32> to vector<16x128xf32>
    %19 = arith.addf %14, %18 : vector<16x128xf32>
    %cst_15 = arith.constant 0.000000e+00 : f32
    %20 = vector.broadcast %cst_15 : f32 to vector<16x128xf32>
    %21 = arith.maximumf %19, %20 : vector<16x128xf32>
    %22 = arith.truncf %21 : vector<16x128xf32> to vector<16x128xbf16>
    %c0_16 = arith.constant 0 : index
    %c0_17 = arith.constant 0 : index
    %23 = vector.load %arg9[%c0_16, %c0_17] : memref<16x128xbf16, #tpu.memory_space<vmem>>, vector<16x128xbf16>
    tpu.vector_store %arg9[%c0_16, %c0_17], %22 {strides = array<i32>} : memref<16x128xbf16, #tpu.memory_space<vmem>>, vector<16x128xbf16>,
    %c1_i32 = arith.constant 1 : i32
    %c0_18 = arith.constant 0 : index
    %c0_19 = arith.constant 0 : index
    %24 = vector.load %arg9[%c0_18, %c0_19] : memref<16x128xbf16, #tpu.memory_space<vmem>>, vector<16x128xbf16>
    %c0_20 = arith.constant 0 : index
    %c0_21 = arith.constant 0 : index
    %25 = vector.load %arg6[%c0_20, %c0_21] : memref<128x128xbf16, #tpu.memory_space<vmem>>, vector<128x128xbf16>
    %cst_22 = arith.constant dense<0.000000e+00> : vector<16x128xf32>
    %26 = tpu.matmul %24, %25, %cst_22 {dimension_numbers = #tpu.dot_dimension_numbers<[1], [0], [0], [1], [0, 0, 1, 1], [], []>} : vector<16x128xbf16>, vector<128x128xbf16>, vector<16x128xf32> -> vector<16x128xf32>
    %c0_23 = arith.constant 0 : index
    %c0_24 = arith.constant 0 : index
    %27 = vector.load %arg7[%c0_23, %c0_24] : memref<1x128xf32, #tpu.memory_space<vmem>>, vector<1x128xf32>
    %28 = vector.broadcast %27 : vector<1x128xf32> to vector<16x128xf32>
    %29 = arith.addf %26, %28 : vector<16x128xf32>
    %c0_25 = arith.constant 0 : index
    %c0_26 = arith.constant 0 : index
    %30 = vector.load %arg8[%c0_25, %c0_26] : memref<16x128xf32, #tpu.memory_space<vmem>>, vector<16x128xf32>
    tpu.vector_store %arg8[%c0_25, %c0_26], %29 {strides = array<i32>} : memref<16x128xf32, #tpu.memory_space<vmem>>, vector<16x128xf32>,
    return
  }
  func.func @transform_0(%arg0: i32) -> (i32, i32) {
    %c0_i32 = arith.constant 0 : i32
    %c0_i32_0 = arith.constant 0 : i32
    return %arg0, %c0_i32 : i32, i32
  }
  func.func @transform_1(%arg0: i32) -> (i32, i32) {
    %c0_i32 = arith.constant 0 : i32
    %c0_i32_0 = arith.constant 0 : i32
    %c0_i32_1 = arith.constant 0 : i32
    return %c0_i32, %c0_i32_0 : i32, i32
  }
  func.func @transform_2(%arg0: i32) -> (i32, i32) {
    %c0_i32 = arith.constant 0 : i32
    %c0_i32_0 = arith.constant 0 : i32
    %c0_i32_1 = arith.constant 0 : i32
    return %c0_i32, %c0_i32_0 : i32, i32
  }
  func.func @transform_3(%arg0: i32) -> (i32, i32, i32) {
    %c0_i32 = arith.constant 0 : i32
    %c0_i32_0 = arith.constant 0 : i32
    %c0_i32_1 = arith.constant 0 : i32
    %c0_i32_2 = arith.constant 0 : i32
    return %c0_i32, %c0_i32_0, %c0_i32_1 : i32, i32, i32
  }
  func.func @transform_4(%arg0: i32) -> (i32, i32, i32) {
    %c0_i32 = arith.constant 0 : i32
    %c0_i32_0 = arith.constant 0 : i32
    %c0_i32_1 = arith.constant 0 : i32
    %c0_i32_2 = arith.constant 0 : i32
    return %c0_i32, %c0_i32_0, %c0_i32_1 : i32, i32, i32
  }
  func.func @transform_5(%arg0: i32) -> (i32, i32) {
    %c0_i32 = arith.constant 0 : i32
    %c0_i32_0 = arith.constant 0 : i32
    %c0_i32_1 = arith.constant 0 : i32
    return %c0_i32, %c0_i32_0 : i32, i32
  }
  func.func @transform_6(%arg0: i32) -> (i32, i32) {
    %c0_i32 = arith.constant 0 : i32
    %c0_i32_0 = arith.constant 0 : i32
    %c0_i32_1 = arith.constant 0 : i32
    return %c0_i32, %c0_i32_0 : i32, i32
  }
  func.func @transform_7(%arg0: i32) -> (i32, i32) {
    %c0_i32 = arith.constant 0 : i32
    %c0_i32_0 = arith.constant 0 : i32
    return %arg0, %c0_i32 : i32, i32
  }
}

module attributes {stable_mosaic.version = 11 : i64} {
  func.func @_mlp_kernel(%arg0: i32, %arg1: memref<16x128xbf16, #tpu.memory_space<vmem>>, %arg2: memref<128x128xbf16, #tpu.memory_space<vmem>>, %arg3: memref<1x128xf32, #tpu.memory_space<vmem>>, %arg4: memref<1x128x128xbf16, #tpu.memory_space<vmem>>, %arg5: memref<1x1x128xf32, #tpu.memory_space<vmem>>, %arg6: memref<128x128xbf16, #tpu.memory_space<vmem>>, %arg7: memref<1x128xf32, #tpu.memory_space<vmem>>, %arg8: memref<16x128xf32, #tpu.memory_space<vmem>>, %arg9: memref<16x128xbf16, #tpu.memory_space<vmem>>) attributes {dimension_semantics = [#tpu.dimension_semantics<parallel>], iteration_bounds = array<i64: 1>, scalar_prefetch = 0 : i64, scratch_operands = 1 : i64, tpu.core_type = #tpu.core_type<tc>, window_params = [{transform_indices = @transform_0, window_bounds = array<i64: 16, 128>}, {pipeline_mode = #tpu.pipeline_mode<synchronous>, transform_indices = @transform_1, window_bounds = array<i64: 128, 128>}, {pipeline_mode = #tpu.pipeline_mode<synchronous>, transform_indices = @transform_2, window_bounds = array<i64: 1, 128>}, {pipeline_mode = #tpu.pipeline_mode<synchronous>, transform_indices = @transform_3, window_bounds = array<i64: 1, 128, 128>}, {pipeline_mode = #tpu.pipeline_mode<synchronous>, transform_indices = @transform_4, window_bounds = array<i64: 1, 1, 128>}, {pipeline_mode = #tpu.pipeline_mode<synchronous>, transform_indices = @transform_5, window_bounds = array<i64: 128, 128>}, {pipeline_mode = #tpu.pipeline_mode<synchronous>, transform_indices = @transform_6, window_bounds = array<i64: 1, 128>}, {transform_indices = @transform_7, window_bounds = array<i64: 16, 128>}]} {
    %c0 = arith.constant 0 : index
    %c0_0 = arith.constant 0 : index
    %0 = vector.load %arg1[%c0, %c0_0] : memref<16x128xbf16, #tpu.memory_space<vmem>>, vector<16x128xbf16>
    %c0_1 = arith.constant 0 : index
    %c0_2 = arith.constant 0 : index
    %1 = vector.load %arg2[%c0_1, %c0_2] : memref<128x128xbf16, #tpu.memory_space<vmem>>, vector<128x128xbf16>
    %cst = arith.constant dense<0.000000e+00> : vector<16x128xf32>
    %2 = tpu.matmul %0, %1, %cst {dimension_numbers = #tpu.dot_dimension_numbers<[1], [0], [0], [1], [0, 0, 1, 1], [], []>} : vector<16x128xbf16>, vector<128x128xbf16>, vector<16x128xf32> -> vector<16x128xf32>
    %c0_3 = arith.constant 0 : index
    %c0_4 = arith.constant 0 : index
    %3 = vector.load %arg3[%c0_3, %c0_4] : memref<1x128xf32, #tpu.memory_space<vmem>>, vector<1x128xf32>
    %4 = vector.broadcast %3 : vector<1x128xf32> to vector<16x128xf32>
    %5 = arith.addf %2, %4 : vector<16x128xf32>
    %cst_5 = arith.constant 0.000000e+00 : f32
    %6 = vector.broadcast %cst_5 : f32 to vector<16x128xf32>
    %7 = arith.maximumf %5, %6 : vector<16x128xf32>
    %8 = arith.truncf %7 : vector<16x128xf32> to vector<16x128xbf16>
    %c0_6 = arith.constant 0 : index
    %c0_7 = arith.constant 0 : index
    %9 = vector.load %arg9[%c0_6, %c0_7] : memref<16x128xbf16, #tpu.memory_space<vmem>>, vector<16x128xbf16>
    tpu.vector_store %arg9[%c0_6, %c0_7], %8 {strides = array<i32>} : memref<16x128xbf16, #tpu.memory_space<vmem>>, vector<16x128xbf16>,
    %c0_i32 = arith.constant 0 : i32
    %c0_8 = arith.constant 0 : index
    %c0_9 = arith.constant 0 : index
    %10 = vector.load %arg9[%c0_8, %c0_9] : memref<16x128xbf16, #tpu.memory_space<vmem>>, vector<16x128xbf16>
    %11 = arith.index_cast %c0_i32 : i32 to index
    %c0_10 = arith.constant 0 : index
    %c0_11 = arith.constant 0 : index
    %12 = vector.load %arg4[%11, %c0_10, %c0_11] : memref<1x128x128xbf16, #tpu.memory_space<vmem>>, vector<1x128x128xbf16>
    %13 = vector.shape_cast %12 : vector<1x128x128xbf16> to vector<128x128xbf16>
    %cst_12 = arith.constant dense<0.000000e+00> : vector<16x128xf32>
    %14 = tpu.matmul %10, %13, %cst_12 {dimension_numbers = #tpu.dot_dimension_numbers<[1], [0], [0], [1], [0, 0, 1, 1], [], []>} : vector<16x128xbf16>, vector<128x128xbf16>, vector<16x128xf32> -> vector<16x128xf32>
    %15 = arith.index_cast %c0_i32 : i32 to index
    %c0_13 = arith.constant 0 : index
    %c0_14 = arith.constant 0 : index
    %16 = vector.load %arg5[%15, %c0_13, %c0_14] : memref<1x1x128xf32, #tpu.memory_space<vmem>>, vector<1x1x128xf32>
    %17 = vector.shape_cast %16 : vector<1x1x128xf32> to vector<1x128xf32>
    %18 = vector.broadcast %17 : vector<1x128xf32> to vector<16x128xf32>
    %19 = arith.addf %14, %18 : vector<16x128xf32>
    %cst_15 = arith.constant 0.000000e+00 : f32
    %20 = vector.broadcast %cst_15 : f32 to vector<16x128xf32>
    %21 = arith.maximumf %19, %20 : vector<16x128xf32>
    %22 = arith.truncf %21 : vector<16x128xf32> to vector<16x128xbf16>
    %c0_16 = arith.constant 0 : index
    %c0_17 = arith.constant 0 : index
    %23 = vector.load %arg9[%c0_16, %c0_17] : memref<16x128xbf16, #tpu.memory_space<vmem>>, vector<16x128xbf16>
    tpu.vector_store %arg9[%c0_16, %c0_17], %22 {strides = array<i32>} : memref<16x128xbf16, #tpu.memory_space<vmem>>, vector<16x128xbf16>,
    %c1_i32 = arith.constant 1 : i32
    %c0_18 = arith.constant 0 : index
    %c0_19 = arith.constant 0 : index
    %24 = vector.load %arg9[%c0_18, %c0_19] : memref<16x128xbf16, #tpu.memory_space<vmem>>, vector<16x128xbf16>
    %c0_20 = arith.constant 0 : index
    %c0_21 = arith.constant 0 : index
    %25 = vector.load %arg6[%c0_20, %c0_21] : memref<128x128xbf16, #tpu.memory_space<vmem>>, vector<128x128xbf16>
    %cst_22 = arith.constant dense<0.000000e+00> : vector<16x128xf32>
    %26 = tpu.matmul %24, %25, %cst_22 {dimension_numbers = #tpu.dot_dimension_numbers<[1], [0], [0], [1], [0, 0, 1, 1], [], []>} : vector<16x128xbf16>, vector<128x128xbf16>, vector<16x128xf32> -> vector<16x128xf32>
    %c0_23 = arith.constant 0 : index
    %c0_24 = arith.constant 0 : index
    %27 = vector.load %arg7[%c0_23, %c0_24] : memref<1x128xf32, #tpu.memory_space<vmem>>, vector<1x128xf32>
    %28 = vector.broadcast %27 : vector<1x128xf32> to vector<16x128xf32>
    %29 = arith.addf %26, %28 : vector<16x128xf32>
    %c0_25 = arith.constant 0 : index
    %c0_26 = arith.constant 0 : index
    %30 = vector.load %arg8[%c0_25, %c0_26] : memref<16x128xf32, #tpu.memory_space<vmem>>, vector<16x128xf32>
    tpu.vector_store %arg8[%c0_25, %c0_26], %29 {strides = array<i32>} : memref<16x128xf32, #tpu.memory_space<vmem>>, vector<16x128xf32>,
    return
  }
  func.func @transform_0(%arg0: i32) -> (i32, i32) {
    %c0_i32 = arith.constant 0 : i32
    %c0_i32_0 = arith.constant 0 : i32
    return %arg0, %c0_i32 : i32, i32
  }
  func.func @transform_1(%arg0: i32) -> (i32, i32) {
    %c0_i32 = arith.constant 0 : i32
    %c0_i32_0 = arith.constant 0 : i32
    %c0_i32_1 = arith.constant 0 : i32
    return %c0_i32, %c0_i32_0 : i32, i32
  }
  func.func @transform_2(%arg0: i32) -> (i32, i32) {
    %c0_i32 = arith.constant 0 : i32
    %c0_i32_0 = arith.constant 0 : i32
    %c0_i32_1 = arith.constant 0 : i32
    return %c0_i32, %c0_i32_0 : i32, i32
  }
  func.func @transform_3(%arg0: i32) -> (i32, i32, i32) {
    %c0_i32 = arith.constant 0 : i32
    %c0_i32_0 = arith.constant 0 : i32
    %c0_i32_1 = arith.constant 0 : i32
    %c0_i32_2 = arith.constant 0 : i32
    return %c0_i32, %c0_i32_0, %c0_i32_1 : i32, i32, i32
  }
  func.func @transform_4(%arg0: i32) -> (i32, i32, i32) {
    %c0_i32 = arith.constant 0 : i32
    %c0_i32_0 = arith.constant 0 : i32
    %c0_i32_1 = arith.constant 0 : i32
    %c0_i32_2 = arith.constant 0 : i32
    return %c0_i32, %c0_i32_0, %c0_i32_1 : i32, i32, i32
  }
  func.func @transform_5(%arg0: i32) -> (i32, i32) {
    %c0_i32 = arith.constant 0 : i32
    %c0_i32_0 = arith.constant 0 : i32
    %c0_i32_1 = arith.constant 0 : i32
    return %c0_i32, %c0_i32_0 : i32, i32
  }
  func.func @transform_6(%arg0: i32) -> (i32, i32) {
    %c0_i32 = arith.constant 0 : i32
    %c0_i32_0 = arith.constant 0 : i32
    %c0_i32_1 = arith.constant 0 : i32
    return %c0_i32, %c0_i32_0 : i32, i32
  }
  func.func @transform_7(%arg0: i32) -> (i32, i32) {
    %c0_i32 = arith.constant 0 : i32
    %c0_i32_0 = arith.constant 0 : i32
    return %arg0, %c0_i32 : i32, i32
  }
}

</mosaic_0001>

<llo_original>
// kernel: tpu_custom_call.1
$region0: #{tpu_custom_call.1}
  #allocation0 [shape = 'u32[]', space=smem, size = 0x4, offset = 0x4, fixed_abs, tag = 'smem constant byte address 0x4 - core index']
  #allocation1 [shape = 'u32[72,128]{1,0:T(1,128)}', space=vmem, size = 0x9000, scoped, tag = 'internal scratch']
  #allocation2 [shape = 'bf16[16,128]{1,0:T(8,128)(2,1)}', space=vmem, size = 0x1000, scoped, tag = 'scratch operand']
  %s0 = inlined_call_operand.hbm [shape: bf16[16,128], index: 0, kind: input, shape index: {}]
  %s1 = inlined_call_operand.hbm [shape: bf16[128,128], index: 1, kind: input, shape index: {}]
  %s2 = inlined_call_operand.vmem [shape: f32[1,128], index: 2, kind: input, shape index: {}]
  %s3 = inlined_call_operand.hbm [shape: bf16[1,128,128], index: 3, kind: input, shape index: {}]
  %s4 = inlined_call_operand.vmem [shape: f32[1,1,128], index: 4, kind: input, shape index: {}]
  %s5 = inlined_call_operand.hbm [shape: bf16[128,128], index: 5, kind: input, shape index: {}]
  %s6 = inlined_call_operand.vmem [shape: f32[1,128], index: 6, kind: input, shape index: {}]
  %s7 = inlined_call_operand.hbm [shape: f32[16,128], index: 7, kind: output, shape index: {}]
  %s8 = sld [smem:[#allocation0]]
  $region54: #{tpu_custom_call.1} parent=0
    _
  %s10 = ssub.s32 1, %s8
  %s11 = scalar_select 0, %s10, %s8
  $region1: #{tpu_custom_call.1} parent=0
    #allocation3 [shape = 'u8[4096]{0}', space=vmem, size = 0x1000, scoped, tag = 'input window, operand 0, single buffered']
    #allocation4 [shape = 's32[1]{0}', space=sflag, size = 0x4, scoped, tag = 'scoped memory for tpu_custom_call.1']
    #allocation5 [shape = 's32[1]{0}', space=sflag, size = 0x4, scoped, tag = 'scoped memory for tpu_custom_call.1']
    #allocation6 [shape = 'u8[32768]{0}', space=vmem, size = 0x8000, scoped, tag = 'input window, operand 1, single buffered']
    #allocation7 [shape = 's32[1]{0}', space=sflag, size = 0x4, scoped, tag = 'scoped memory for tpu_custom_call.1']
    #allocation8 [shape = 'u8[32768]{0}', space=vmem, size = 0x8000, scoped, tag = 'input window, operand 3, single buffered']
    #allocation9 [shape = 'u8[32768]{0}', space=vmem, size = 0x8000, scoped, tag = 'input window, operand 5, single buffered']
    #allocation10 [shape = 's32[1]{0}', space=sflag, size = 0x4, scoped, tag = 'scoped memory for tpu_custom_call.1']
    #allocation11 [shape = 'u8[8192]{0}', space=vmem, size = 0x2000, scoped, tag = 'output window, operand 0, single buffered']
    %12 = vsyncpa [#allocation4], 0
    %13 = vsyncpa [#allocation7], 0
    %14 = vsyncpa [#allocation10], 0
    %15 = vsyncpa [#allocation5], 0
    // Predicated region
    $region2: #{tpu_custom_call.1} parent=1 // pred_check
      _
    $region3: #{tpu_custom_call.1} parent=1 // pred_check_branch
      %17 = sbr.rel (0) target = $region5
    $region4: #{tpu_custom_call.1} parent=1 // pred_region
      %19 = vsyncadd [#allocation4], 0
      %s20 = sshll.u32 %s0, 4
      %s21 = int_to_ptr.hbm [resolvable:$true] %s20
      %s22 = sshll.u32 [#allocation3], 4
      %s23 = int_to_ptr.vmem [resolvable:$true] %s22
      %28 = dma.hbm_to_vmem [thread:$0]  %s21, 128, %s23, [#allocation4], 64, 64, 4
    $region5: #{tpu_custom_call.1} parent=1 // pred_fallthru
      _
    // Predicated region
    $region6: #{tpu_custom_call.1} parent=1 // pred_check
      _
    $region7: #{tpu_custom_call.1} parent=1 // pred_check_branch
      %30 = sbr.rel (0) target = $region9
    $region8: #{tpu_custom_call.1} parent=1 // pred_region
      %32 = vsyncadd [#allocation7], 0
      %s33 = sshll.u32 %s1, 4
      %s34 = int_to_ptr.hbm [resolvable:$true] %s33
      %s35 = sshll.u32 [#allocation6], 4
      %s36 = int_to_ptr.vmem [resolvable:$true] %s35
      %41 = dma.hbm_to_vmem [thread:$0]  %s34, 1024, %s36, [#allocation7], 64, 64, 4
    $region9: #{tpu_custom_call.1} parent=1 // pred_fallthru
      _
    // Predicated region
    $region10: #{tpu_custom_call.1} parent=1 // pred_check
      _
    $region11: #{tpu_custom_call.1} parent=1 // pred_check_branch
      %43 = sbr.rel (0) target = $region13
    $region12: #{tpu_custom_call.1} parent=1 // pred_region
      _
    $region13: #{tpu_custom_call.1} parent=1 // pred_fallthru
      _
    // Predicated region
    $region14: #{tpu_custom_call.1} parent=1 // pred_check
      _
    $region15: #{tpu_custom_call.1} parent=1 // pred_check_branch
      %45 = sbr.rel (0) target = $region17
    $region16: #{tpu_custom_call.1} parent=1 // pred_region
      %47 = vsyncadd [#allocation7], 0
      %s48 = sshll.u32 %s3, 4
      %s49 = int_to_ptr.hbm [resolvable:$true] %s48
      %s50 = sshll.u32 [#allocation8], 4
      %s51 = int_to_ptr.vmem [resolvable:$true] %s50
      %56 = dma.hbm_to_vmem [thread:$0]  %s49, 1024, %s51, [#allocation7], 64, 64, 4
    $region17: #{tpu_custom_call.1} parent=1 // pred_fallthru
      _
    // Predicated region
    $region18: #{tpu_custom_call.1} parent=1 // pred_check
      _
    $region19: #{tpu_custom_call.1} parent=1 // pred_check_branch
      %58 = sbr.rel (0) target = $region21
    $region20: #{tpu_custom_call.1} parent=1 // pred_region
      _
    $region21: #{tpu_custom_call.1} parent=1 // pred_fallthru
      _
    // Predicated region
    $region22: #{tpu_custom_call.1} parent=1 // pred_check
      _
    $region23: #{tpu_custom_call.1} parent=1 // pred_check_branch
      %60 = sbr.rel (0) target = $region25
    $region24: #{tpu_custom_call.1} parent=1 // pred_region
      %62 = vsyncadd [#allocation10], 0
      %s63 = sshll.u32 %s5, 4
      %s64 = int_to_ptr.hbm [resolvable:$true] %s63
      %s65 = sshll.u32 [#allocation9], 4
      %s66 = int_to_ptr.vmem [resolvable:$true] %s65
      %71 = dma.hbm_to_vmem [thread:$0]  %s64, 1024, %s66, [#allocation10], 64, 64, 4
    $region25: #{tpu_custom_call.1} parent=1 // pred_fallthru
      _
    // Predicated region
    $region26: #{tpu_custom_call.1} parent=1 // pred_check
      _
    $region27: #{tpu_custom_call.1} parent=1 // pred_check_branch
      %73 = sbr.rel (0) target = $region29
    $region28: #{tpu_custom_call.1} parent=1 // pred_region
      _
    $region29: #{tpu_custom_call.1} parent=1 // pred_fallthru
      _
    // Predicated region
    $region30: #{tpu_custom_call.1} parent=1 // pred_check
      _
    $region31: #{tpu_custom_call.1} parent=1 // pred_check_branch
      %75 = sbr.rel (0) target = $region33
    $region32: #{tpu_custom_call.1} parent=1 // pred_region
      %77 = dma.done [#allocation4], 128
    $region33: #{tpu_custom_call.1} parent=1 // pred_fallthru
      _
    // Predicated region
    $region34: #{tpu_custom_call.1} parent=1 // pred_check
      _
    $region35: #{tpu_custom_call.1} parent=1 // pred_check_branch
      %79 = sbr.rel (0) target = $region37
    $region36: #{tpu_custom_call.1} parent=1 // pred_region
      %81 = dma.done [#allocation7], 1024
    $region37: #{tpu_custom_call.1} parent=1 // pred_fallthru
      _
    // Predicated region
    $region38: #{tpu_custom_call.1} parent=1 // pred_check
      _
    $region39: #{tpu_custom_call.1} parent=1 // pred_check_branch
      %83 = sbr.rel (0) target = $region41
    $region40: #{tpu_custom_call.1} parent=1 // pred_region
      %85 = dma.done [#allocation7], 1024
    $region41: #{tpu_custom_call.1} parent=1 // pred_fallthru
      _
    // Predicated region
    $region42: #{tpu_custom_call.1} parent=1 // pred_check
      _
    $region43: #{tpu_custom_call.1} parent=1 // pred_check_branch
      %87 = sbr.rel (0) target = $region45
    $region44: #{tpu_custom_call.1} parent=1 // pred_region
      %89 = dma.done [#allocation10], 1024
    $region45: #{tpu_custom_call.1} parent=1 // pred_fallthru
      _
    %v90 = vld [vmem:[#allocation3] sm:$0xf]
    %v91 = vld [vmem:[#allocation3 + $0x4] sm:$0xf]
    %v92 = vld [vmem:[#allocation6] sm:$0xf]
    %v93 = vld [vmem:[#allocation6 + $0x4] sm:$0xf]
    %v94 = vld [vmem:[#allocation6 + $0x8] sm:$0xf]
    %v95 = vld [vmem:[#allocation6 + $0xc] sm:$0xf]
    %v96 = vld [vmem:[#allocation6 + $0x10] sm:$0xf]
    %v97 = vld [vmem:[#allocation6 + $0x14] sm:$0xf]
    %v98 = vld [vmem:[#allocation6 + $0x18] sm:$0xf]
    %v99 = vld [vmem:[#allocation6 + $0x1c] sm:$0xf]
    %v100 = vld [vmem:[#allocation6 + $0x20] sm:$0xf]
    %v101 = vld [vmem:[#allocation6 + $0x24] sm:$0xf]
    %v102 = vld [vmem:[#allocation6 + $0x28] sm:$0xf]
    %v103 = vld [vmem:[#allocation6 + $0x2c] sm:$0xf]
    %v104 = vld [vmem:[#allocation6 + $0x30] sm:$0xf]
    %v105 = vld [vmem:[#allocation6 + $0x34] sm:$0xf]
    %v106 = vld [vmem:[#allocation6 + $0x38] sm:$0xf]
    %v107 = vld [vmem:[#allocation6 + $0x3c] sm:$0xf]
    %v108 = vld [vmem:[%s2] sm:$0x1]
    %v110 = vperm.slane %v108, 0
    %v114 = vunpack.c.l.b16 %v90
    %v115 = vunpack.c.l.b16 %v91
    %v116 = vpack.c.b16 %v115, %v114
    %v134 = vunpack.c.l.b16 %v92
    %v135 = vunpack.c.l.b16 %v93
    %v136 = vunpack.c.l.b16 %v94
    %v137 = vunpack.c.l.b16 %v95
    %v138 = vunpack.c.l.b16 %v96
    %v139 = vunpack.c.l.b16 %v97
    %v140 = vunpack.c.l.b16 %v98
    %v141 = vunpack.c.l.b16 %v99
    %v142 = vunpack.c.l.b16 %v100
    %v143 = vunpack.c.l.b16 %v101
    %v144 = vunpack.c.l.b16 %v102
    %v145 = vunpack.c.l.b16 %v103
    %v146 = vunpack.c.l.b16 %v104
    %v147 = vunpack.c.l.b16 %v105
    %v148 = vunpack.c.l.b16 %v106
    %v149 = vunpack.c.l.b16 %v107
    %v150 = vpack.c.b16 %v135, %v134
    %v151 = vpack.c.b16 %v137, %v136
    %v152 = vpack.c.b16 %v139, %v138
    %v153 = vpack.c.b16 %v141, %v140
    %v154 = vpack.c.b16 %v143, %v142
    %v155 = vpack.c.b16 %v145, %v144
    %v156 = vpack.c.b16 %v147, %v146
    %v157 = vpack.c.b16 %v149, %v148
    %166 = vmatpush.bf16.msra.mxu0 %v157
    %167 = vmatpush.bf16.msra.mxu0 %v156
    %168 = vmatpush.bf16.msra.mxu0 %v155
    %169 = vmatpush.bf16.msra.mxu0 %v154
    %170 = vmatpush.bf16.msra.mxu0 %v153
    %171 = vmatpush.bf16.msra.mxu0 %v152
    %172 = vmatpush.bf16.msra.mxu0 %v151
    %173 = vmatpush.bf16.msra.mxu0 %v150
    %174 = vmatmul.bf16.gmra.mxu0 %v116
    %v175 = vpop.f32.mrf.mxu0
    %v176 = vadd.f32 %v110, %v175
    %v177 = vpop.f32.mrf.mxu0
    %v178 = vadd.f32 %v110, %v177
    %179 = vdwg.mxu0
    %v180 = vmax.f32 %v176, 0.0
    %v181 = vmax.f32 %v178, 0.0
    %v182 = vpack.c.bf16 %v180, %v180
    %v183 = vpack.c.bf16 %v181, %v181
    %184 = vst [vmem:[#allocation2] sm:$0xf] %v182
    %185 = vst [vmem:[#allocation2 + $0x4] sm:$0xf] %v183
    %v186 = vld [vmem:[#allocation2] sm:$0xf]
    %v187 = vld [vmem:[#allocation2 + $0x4] sm:$0xf]
    %v188 = vld [vmem:[#allocation8] sm:$0xf]
    %v189 = vld [vmem:[#allocation8 + $0x4] sm:$0xf]
    %v190 = vld [vmem:[#allocation8 + $0x8] sm:$0xf]
    %v191 = vld [vmem:[#allocation8 + $0xc] sm:$0xf]
    %v192 = vld [vmem:[#allocation8 + $0x10] sm:$0xf]
    %v193 = vld [vmem:[#allocation8 + $0x14] sm:$0xf]
    %v194 = vld [vmem:[#allocation8 + $0x18] sm:$0xf]
    %v195 = vld [vmem:[#allocation8 + $0x1c] sm:$0xf]
    %v196 = vld [vmem:[#allocation8 + $0x20] sm:$0xf]
    %v197 = vld [vmem:[#allocation8 + $0x24] sm:$0xf]
    %v198 = vld [vmem:[#allocation8 + $0x28] sm:$0xf]
    %v199 = vld [vmem:[#allocation8 + $0x2c] sm:$0xf]
    %v200 = vld [vmem:[#allocation8 + $0x30] sm:$0xf]
    %v201 = vld [vmem:[#allocation8 + $0x34] sm:$0xf]
    %v202 = vld [vmem:[#allocation8 + $0x38] sm:$0xf]
    %v203 = vld [vmem:[#allocation8 + $0x3c] sm:$0xf]
    %v204 = vld [vmem:[%s4] sm:$0x1]
    %v206 = vperm.slane %v204, 0
    %v210 = vunpack.c.l.b16 %v186
    %v211 = vunpack.c.l.b16 %v187
    %v212 = vpack.c.b16 %v211, %v210
    %v230 = vunpack.c.l.b16 %v188
    %v231 = vunpack.c.l.b16 %v189
    %v232 = vunpack.c.l.b16 %v190
    %v233 = vunpack.c.l.b16 %v191
    %v234 = vunpack.c.l.b16 %v192
    %v235 = vunpack.c.l.b16 %v193
    %v236 = vunpack.c.l.b16 %v194
    %v237 = vunpack.c.l.b16 %v195
    %v238 = vunpack.c.l.b16 %v196
    %v239 = vunpack.c.l.b16 %v197
    %v240 = vunpack.c.l.b16 %v198
    %v241 = vunpack.c.l.b16 %v199
    %v242 = vunpack.c.l.b16 %v200
    %v243 = vunpack.c.l.b16 %v201
    %v244 = vunpack.c.l.b16 %v202
    %v245 = vunpack.c.l.b16 %v203
    %v246 = vpack.c.b16 %v231, %v230
    %v247 = vpack.c.b16 %v233, %v232
    %v248 = vpack.c.b16 %v235, %v234
    %v249 = vpack.c.b16 %v237, %v236
    %v250 = vpack.c.b16 %v239, %v238
    %v251 = vpack.c.b16 %v241, %v240
    %v252 = vpack.c.b16 %v243, %v242
    %v253 = vpack.c.b16 %v245, %v244
    %262 = vmatpush.bf16.msra.mxu0 %v253
    %263 = vmatpush.bf16.msra.mxu0 %v252
    %264 = vmatpush.bf16.msra.mxu0 %v251
    %265 = vmatpush.bf16.msra.mxu0 %v250
    %266 = vmatpush.bf16.msra.mxu0 %v249
    %267 = vmatpush.bf16.msra.mxu0 %v248
    %268 = vmatpush.bf16.msra.mxu0 %v247
    %269 = vmatpush.bf16.msra.mxu0 %v246
    %270 = vmatmul.bf16.gmra.mxu0 %v212
    %v271 = vpop.f32.mrf.mxu0
    %v272 = vadd.f32 %v206, %v271
    %v273 = vpop.f32.mrf.mxu0
    %v274 = vadd.f32 %v206, %v273
    %275 = vdwg.mxu0
    %v276 = vmax.f32 %v272, 0.0
    %v277 = vmax.f32 %v274, 0.0
    %v278 = vpack.c.bf16 %v276, %v276
    %v279 = vpack.c.bf16 %v277, %v277
    %280 = vst [vmem:[#allocation2] sm:$0xf] %v278
    %281 = vst [vmem:[#allocation2 + $0x4] sm:$0xf] %v279
    %v282 = vld [vmem:[#allocation2] sm:$0xf]
    %v283 = vld [vmem:[#allocation2 + $0x4] sm:$0xf]
    %v284 = vld [vmem:[#allocation9] sm:$0xf]
    %v285 = vld [vmem:[#allocation9 + $0x4] sm:$0xf]
    %v286 = vld [vmem:[#allocation9 + $0x8] sm:$0xf]
    %v287 = vld [vmem:[#allocation9 + $0xc] sm:$0xf]
    %v288 = vld [vmem:[#allocation9 + $0x10] sm:$0xf]
    %v289 = vld [vmem:[#allocation9 + $0x14] sm:$0xf]
    %v290 = vld [vmem:[#allocation9 + $0x18] sm:$0xf]
    %v291 = vld [vmem:[#allocation9 + $0x1c] sm:$0xf]
    %v292 = vld [vmem:[#allocation9 + $0x20] sm:$0xf]
    %v293 = vld [vmem:[#allocation9 + $0x24] sm:$0xf]
    %v294 = vld [vmem:[#allocation9 + $0x28] sm:$0xf]
    %v295 = vld [vmem:[#allocation9 + $0x2c] sm:$0xf]
    %v296 = vld [vmem:[#allocation9 + $0x30] sm:$0xf]
    %v297 = vld [vmem:[#allocation9 + $0x34] sm:$0xf]
    %v298 = vld [vmem:[#allocation9 + $0x38] sm:$0xf]
    %v299 = vld [vmem:[#allocation9 + $0x3c] sm:$0xf]
    %v300 = vld [vmem:[%s6] sm:$0x1]
    %v302 = vperm.slane %v300, 0
    %v306 = vunpack.c.l.b16 %v282
    %v307 = vunpack.c.l.b16 %v283
    %v308 = vpack.c.b16 %v307, %v306
    %v326 = vunpack.c.l.b16 %v284
    %v327 = vunpack.c.l.b16 %v285
    %v328 = vunpack.c.l.b16 %v286
    %v329 = vunpack.c.l.b16 %v287
    %v330 = vunpack.c.l.b16 %v288
    %v331 = vunpack.c.l.b16 %v289
    %v332 = vunpack.c.l.b16 %v290
    %v333 = vunpack.c.l.b16 %v291
    %v334 = vunpack.c.l.b16 %v292
    %v335 = vunpack.c.l.b16 %v293
    %v336 = vunpack.c.l.b16 %v294
    %v337 = vunpack.c.l.b16 %v295
    %v338 = vunpack.c.l.b16 %v296
    %v339 = vunpack.c.l.b16 %v297
    %v340 = vunpack.c.l.b16 %v298
    %v341 = vunpack.c.l.b16 %v299
    %v342 = vpack.c.b16 %v327, %v326
    %v343 = vpack.c.b16 %v329, %v328
    %v344 = vpack.c.b16 %v331, %v330
    %v345 = vpack.c.b16 %v333, %v332
    %v346 = vpack.c.b16 %v335, %v334
    %v347 = vpack.c.b16 %v337, %v336
    %v348 = vpack.c.b16 %v339, %v338
    %v349 = vpack.c.b16 %v341, %v340
    %358 = vmatpush.bf16.msra.mxu0 %v349
    %359 = vmatpush.bf16.msra.mxu0 %v348
    %360 = vmatpush.bf16.msra.mxu0 %v347
    %361 = vmatpush.bf16.msra.mxu0 %v346
    %362 = vmatpush.bf16.msra.mxu0 %v345
    %363 = vmatpush.bf16.msra.mxu0 %v344
    %364 = vmatpush.bf16.msra.mxu0 %v343
    %365 = vmatpush.bf16.msra.mxu0 %v342
    %366 = vmatmul.bf16.gmra.mxu0 %v308
    %v367 = vpop.f32.mrf.mxu0
    %v368 = vadd.f32 %v302, %v367
    %v369 = vpop.f32.mrf.mxu0
    %v370 = vadd.f32 %v302, %v369
    %371 = vdwg.mxu0
    %372 = vst [vmem:[#allocation11] sm:$0xff] %v368
    %373 = vst [vmem:[#allocation11 + $0x8] sm:$0xff] %v370
    // Predicated region
    $region46: #{tpu_custom_call.1} parent=1 // pred_check
      _
    $region47: #{tpu_custom_call.1} parent=1 // pred_check_branch
      %375 = sbr.rel (0) target = $region49
    $region48: #{tpu_custom_call.1} parent=1 // pred_region
      %377 = vsyncadd [#allocation5], 0
      %s378 = sshll.u32 [#allocation11], 4
      %s379 = int_to_ptr.vmem [resolvable:$true] %s378
      %s380 = sshll.u32 %s7, 4
      %s381 = int_to_ptr.hbm [resolvable:$true] %s380
      %386 = dma.vmem_to_hbm [thread:$0]  %s379, 256, %s381, [#allocation5], 128, 128, 8
    $region49: #{tpu_custom_call.1} parent=1 // pred_fallthru
      _
    // Predicated region
    $region50: #{tpu_custom_call.1} parent=1 // pred_check
      _
    $region51: #{tpu_custom_call.1} parent=1 // pred_check_branch
      %388 = sbr.rel (0) target = $region53
    $region52: #{tpu_custom_call.1} parent=1 // pred_region
      %390 = dma.done [#allocation5], 256
    $region53: #{tpu_custom_call.1} parent=1 // pred_fallthru
      _
    %391 = vsyncpa [#allocation4], 1
    %392 = vsyncpa [#allocation7], 1
    %393 = vsyncpa [#allocation10], 1
    %394 = vsyncpa [#allocation5], 1

// kernel: tpu_custom_call.1
$region0: #{tpu_custom_call.1}
  #allocation0 [shape = 'u32[]', space=smem, size = 0x4, offset = 0x4, fixed_abs, tag = 'smem constant byte address 0x4 - core index']
  #allocation1 [shape = 'u32[72,128]{1,0:T(1,128)}', space=vmem, size = 0x9000, scoped, tag = 'internal scratch']
  #allocation2 [shape = 'bf16[16,128]{1,0:T(8,128)(2,1)}', space=vmem, size = 0x1000, scoped, tag = 'scratch operand']
  %s0 = inlined_call_operand.hbm [shape: bf16[16,128], index: 0, kind: input, shape index: {}]
  %s1 = inlined_call_operand.hbm [shape: bf16[128,128], index: 1, kind: input, shape index: {}]
  %s2 = inlined_call_operand.vmem [shape: f32[1,128], index: 2, kind: input, shape index: {}]
  %s3 = inlined_call_operand.hbm [shape: bf16[1,128,128], index: 3, kind: input, shape index: {}]
  %s4 = inlined_call_operand.vmem [shape: f32[1,1,128], index: 4, kind: input, shape index: {}]
  %s5 = inlined_call_operand.hbm [shape: bf16[128,128], index: 5, kind: input, shape index: {}]
  %s6 = inlined_call_operand.vmem [shape: f32[1,128], index: 6, kind: input, shape index: {}]
  %s7 = inlined_call_operand.hbm [shape: f32[16,128], index: 7, kind: output, shape index: {}]
  %s8 = sld [smem:[#allocation0]]
  $region54: #{tpu_custom_call.1} parent=0
    _
  %s10 = ssub.s32 1, %s8
  %s11 = scalar_select 0, %s10, %s8
  $region1: #{tpu_custom_call.1} parent=0
    #allocation3 [shape = 'u8[4096]{0}', space=vmem, size = 0x1000, scoped, tag = 'input window, operand 0, single buffered']
    #allocation4 [shape = 's32[1]{0}', space=sflag, size = 0x4, scoped, tag = 'scoped memory for tpu_custom_call.1']
    #allocation5 [shape = 's32[1]{0}', space=sflag, size = 0x4, scoped, tag = 'scoped memory for tpu_custom_call.1']
    #allocation6 [shape = 'u8[32768]{0}', space=vmem, size = 0x8000, scoped, tag = 'input window, operand 1, single buffered']
    #allocation7 [shape = 's32[1]{0}', space=sflag, size = 0x4, scoped, tag = 'scoped memory for tpu_custom_call.1']
    #allocation8 [shape = 'u8[32768]{0}', space=vmem, size = 0x8000, scoped, tag = 'input window, operand 3, single buffered']
    #allocation9 [shape = 'u8[32768]{0}', space=vmem, size = 0x8000, scoped, tag = 'input window, operand 5, single buffered']
    #allocation10 [shape = 's32[1]{0}', space=sflag, size = 0x4, scoped, tag = 'scoped memory for tpu_custom_call.1']
    #allocation11 [shape = 'u8[8192]{0}', space=vmem, size = 0x2000, scoped, tag = 'output window, operand 0, single buffered']
    %12 = vsyncpa [#allocation4], 0
    %13 = vsyncpa [#allocation7], 0
    %14 = vsyncpa [#allocation10], 0
    %15 = vsyncpa [#allocation5], 0
    // Predicated region
    $region2: #{tpu_custom_call.1} parent=1 // pred_check
      _
    $region3: #{tpu_custom_call.1} parent=1 // pred_check_branch
      %17 = sbr.rel (0) target = $region5
    $region4: #{tpu_custom_call.1} parent=1 // pred_region
      %19 = vsyncadd [#allocation4], 0
      %s20 = sshll.u32 %s0, 4
      %s21 = int_to_ptr.hbm [resolvable:$true] %s20
      %s22 = sshll.u32 [#allocation3], 4
      %s23 = int_to_ptr.vmem [resolvable:$true] %s22
      %28 = dma.hbm_to_vmem [thread:$0]  %s21, 128, %s23, [#allocation4], 64, 64, 4
    $region5: #{tpu_custom_call.1} parent=1 // pred_fallthru
      _
    // Predicated region
    $region6: #{tpu_custom_call.1} parent=1 // pred_check
      _
    $region7: #{tpu_custom_call.1} parent=1 // pred_check_branch
      %30 = sbr.rel (0) target = $region9
    $region8: #{tpu_custom_call.1} parent=1 // pred_region
      %32 = vsyncadd [#allocation7], 0
      %s33 = sshll.u32 %s1, 4
      %s34 = int_to_ptr.hbm [resolvable:$true] %s33
      %s35 = sshll.u32 [#allocation6], 4
      %s36 = int_to_ptr.vmem [resolvable:$true] %s35
      %41 = dma.hbm_to_vmem [thread:$0]  %s34, 1024, %s36, [#allocation7], 64, 64, 4
    $region9: #{tpu_custom_call.1} parent=1 // pred_fallthru
      _
    // Predicated region
    $region10: #{tpu_custom_call.1} parent=1 // pred_check
      _
    $region11: #{tpu_custom_call.1} parent=1 // pred_check_branch
      %43 = sbr.rel (0) target = $region13
    $region12: #{tpu_custom_call.1} parent=1 // pred_region
      _
    $region13: #{tpu_custom_call.1} parent=1 // pred_fallthru
      _
    // Predicated region
    $region14: #{tpu_custom_call.1} parent=1 // pred_check
      _
    $region15: #{tpu_custom_call.1} parent=1 // pred_check_branch
      %45 = sbr.rel (0) target = $region17
    $region16: #{tpu_custom_call.1} parent=1 // pred_region
      %47 = vsyncadd [#allocation7], 0
      %s48 = sshll.u32 %s3, 4
      %s49 = int_to_ptr.hbm [resolvable:$true] %s48
      %s50 = sshll.u32 [#allocation8], 4
      %s51 = int_to_ptr.vmem [resolvable:$true] %s50
      %56 = dma.hbm_to_vmem [thread:$0]  %s49, 1024, %s51, [#allocation7], 64, 64, 4
    $region17: #{tpu_custom_call.1} parent=1 // pred_fallthru
      _
    // Predicated region
    $region18: #{tpu_custom_call.1} parent=1 // pred_check
      _
    $region19: #{tpu_custom_call.1} parent=1 // pred_check_branch
      %58 = sbr.rel (0) target = $region21
    $region20: #{tpu_custom_call.1} parent=1 // pred_region
      _
    $region21: #{tpu_custom_call.1} parent=1 // pred_fallthru
      _
    // Predicated region
    $region22: #{tpu_custom_call.1} parent=1 // pred_check
      _
    $region23: #{tpu_custom_call.1} parent=1 // pred_check_branch
      %60 = sbr.rel (0) target = $region25
    $region24: #{tpu_custom_call.1} parent=1 // pred_region
      %62 = vsyncadd [#allocation10], 0
      %s63 = sshll.u32 %s5, 4
      %s64 = int_to_ptr.hbm [resolvable:$true] %s63
      %s65 = sshll.u32 [#allocation9], 4
      %s66 = int_to_ptr.vmem [resolvable:$true] %s65
      %71 = dma.hbm_to_vmem [thread:$0]  %s64, 1024, %s66, [#allocation10], 64, 64, 4
    $region25: #{tpu_custom_call.1} parent=1 // pred_fallthru
      _
    // Predicated region
    $region26: #{tpu_custom_call.1} parent=1 // pred_check
      _
    $region27: #{tpu_custom_call.1} parent=1 // pred_check_branch
      %73 = sbr.rel (0) target = $region29
    $region28: #{tpu_custom_call.1} parent=1 // pred_region
      _
    $region29: #{tpu_custom_call.1} parent=1 // pred_fallthru
      _
    // Predicated region
    $region30: #{tpu_custom_call.1} parent=1 // pred_check
      _
    $region31: #{tpu_custom_call.1} parent=1 // pred_check_branch
      %75 = sbr.rel (0) target = $region33
    $region32: #{tpu_custom_call.1} parent=1 // pred_region
      %77 = dma.done [#allocation4], 128
    $region33: #{tpu_custom_call.1} parent=1 // pred_fallthru
      _
    // Predicated region
    $region34: #{tpu_custom_call.1} parent=1 // pred_check
      _
    $region35: #{tpu_custom_call.1} parent=1 // pred_check_branch
      %79 = sbr.rel (0) target = $region37
    $region36: #{tpu_custom_call.1} parent=1 // pred_region
      %81 = dma.done [#allocation7], 1024
    $region37: #{tpu_custom_call.1} parent=1 // pred_fallthru
      _
    // Predicated region
    $region38: #{tpu_custom_call.1} parent=1 // pred_check
      _
    $region39: #{tpu_custom_call.1} parent=1 // pred_check_branch
      %83 = sbr.rel (0) target = $region41
    $region40: #{tpu_custom_call.1} parent=1 // pred_region
      %85 = dma.done [#allocation7], 1024
    $region41: #{tpu_custom_call.1} parent=1 // pred_fallthru
      _
    // Predicated region
    $region42: #{tpu_custom_call.1} parent=1 // pred_check
      _
    $region43: #{tpu_custom_call.1} parent=1 // pred_check_branch
      %87 = sbr.rel (0) target = $region45
    $region44: #{tpu_custom_call.1} parent=1 // pred_region
      %89 = dma.done [#allocation10], 1024
    $region45: #{tpu_custom_call.1} parent=1 // pred_fallthru
      _
    %v90 = vld [vmem:[#allocation3] sm:$0xf]
    %v91 = vld [vmem:[#allocation3 + $0x4] sm:$0xf]
    %v92 = vld [vmem:[#allocation6] sm:$0xf]
    %v93 = vld [vmem:[#allocation6 + $0x4] sm:$0xf]
    %v94 = vld [vmem:[#allocation6 + $0x8] sm:$0xf]
    %v95 = vld [vmem:[#allocation6 + $0xc] sm:$0xf]
    %v96 = vld [vmem:[#allocation6 + $0x10] sm:$0xf]
    %v97 = vld [vmem:[#allocation6 + $0x14] sm:$0xf]
    %v98 = vld [vmem:[#allocation6 + $0x18] sm:$0xf]
    %v99 = vld [vmem:[#allocation6 + $0x1c] sm:$0xf]
    %v100 = vld [vmem:[#allocation6 + $0x20] sm:$0xf]
    %v101 = vld [vmem:[#allocation6 + $0x24] sm:$0xf]
    %v102 = vld [vmem:[#allocation6 + $0x28] sm:$0xf]
    %v103 = vld [vmem:[#allocation6 + $0x2c] sm:$0xf]
    %v104 = vld [vmem:[#allocation6 + $0x30] sm:$0xf]
    %v105 = vld [vmem:[#allocation6 + $0x34] sm:$0xf]
    %v106 = vld [vmem:[#allocation6 + $0x38] sm:$0xf]
    %v107 = vld [vmem:[#allocation6 + $0x3c] sm:$0xf]
    %v108 = vld [vmem:[%s2] sm:$0x1]
    %v110 = vperm.slane %v108, 0
    %v114 = vunpack.c.l.b16 %v90
    %v115 = vunpack.c.l.b16 %v91
    %v116 = vpack.c.b16 %v115, %v114
    %v134 = vunpack.c.l.b16 %v92
    %v135 = vunpack.c.l.b16 %v93
    %v136 = vunpack.c.l.b16 %v94
    %v137 = vunpack.c.l.b16 %v95
    %v138 = vunpack.c.l.b16 %v96
    %v139 = vunpack.c.l.b16 %v97
    %v140 = vunpack.c.l.b16 %v98
    %v141 = vunpack.c.l.b16 %v99
    %v142 = vunpack.c.l.b16 %v100
    %v143 = vunpack.c.l.b16 %v101
    %v144 = vunpack.c.l.b16 %v102
    %v145 = vunpack.c.l.b16 %v103
    %v146 = vunpack.c.l.b16 %v104
    %v147 = vunpack.c.l.b16 %v105
    %v148 = vunpack.c.l.b16 %v106
    %v149 = vunpack.c.l.b16 %v107
    %v150 = vpack.c.b16 %v135, %v134
    %v151 = vpack.c.b16 %v137, %v136
    %v152 = vpack.c.b16 %v139, %v138
    %v153 = vpack.c.b16 %v141, %v140
    %v154 = vpack.c.b16 %v143, %v142
    %v155 = vpack.c.b16 %v145, %v144
    %v156 = vpack.c.b16 %v147, %v146
    %v157 = vpack.c.b16 %v149, %v148
    %166 = vmatpush.bf16.msra.mxu0 %v157
    %167 = vmatpush.bf16.msra.mxu0 %v156
    %168 = vmatpush.bf16.msra.mxu0 %v155
    %169 = vmatpush.bf16.msra.mxu0 %v154
    %170 = vmatpush.bf16.msra.mxu0 %v153
    %171 = vmatpush.bf16.msra.mxu0 %v152
    %172 = vmatpush.bf16.msra.mxu0 %v151
    %173 = vmatpush.bf16.msra.mxu0 %v150
    %174 = vmatmul.bf16.gmra.mxu0 %v116
    %v175 = vpop.f32.mrf.mxu0
    %v176 = vadd.f32 %v110, %v175
    %v177 = vpop.f32.mrf.mxu0
    %v178 = vadd.f32 %v110, %v177
    %179 = vdwg.mxu0
    %v180 = vmax.f32 %v176, 0.0
    %v181 = vmax.f32 %v178, 0.0
    %v182 = vpack.c.bf16 %v180, %v180
    %v183 = vpack.c.bf16 %v181, %v181
    %184 = vst [vmem:[#allocation2] sm:$0xf] %v182
    %185 = vst [vmem:[#allocation2 + $0x4] sm:$0xf] %v183
    %v186 = vld [vmem:[#allocation2] sm:$0xf]
    %v187 = vld [vmem:[#allocation2 + $0x4] sm:$0xf]
    %v188 = vld [vmem:[#allocation8] sm:$0xf]
    %v189 = vld [vmem:[#allocation8 + $0x4] sm:$0xf]
    %v190 = vld [vmem:[#allocation8 + $0x8] sm:$0xf]
    %v191 = vld [vmem:[#allocation8 + $0xc] sm:$0xf]
    %v192 = vld [vmem:[#allocation8 + $0x10] sm:$0xf]
    %v193 = vld [vmem:[#allocation8 + $0x14] sm:$0xf]
    %v194 = vld [vmem:[#allocation8 + $0x18] sm:$0xf]
    %v195 = vld [vmem:[#allocation8 + $0x1c] sm:$0xf]
    %v196 = vld [vmem:[#allocation8 + $0x20] sm:$0xf]
    %v197 = vld [vmem:[#allocation8 + $0x24] sm:$0xf]
    %v198 = vld [vmem:[#allocation8 + $0x28] sm:$0xf]
    %v199 = vld [vmem:[#allocation8 + $0x2c] sm:$0xf]
    %v200 = vld [vmem:[#allocation8 + $0x30] sm:$0xf]
    %v201 = vld [vmem:[#allocation8 + $0x34] sm:$0xf]
    %v202 = vld [vmem:[#allocation8 + $0x38] sm:$0xf]
    %v203 = vld [vmem:[#allocation8 + $0x3c] sm:$0xf]
    %v204 = vld [vmem:[%s4] sm:$0x1]
    %v206 = vperm.slane %v204, 0
    %v210 = vunpack.c.l.b16 %v186
    %v211 = vunpack.c.l.b16 %v187
    %v212 = vpack.c.b16 %v211, %v210
    %v230 = vunpack.c.l.b16 %v188
    %v231 = vunpack.c.l.b16 %v189
    %v232 = vunpack.c.l.b16 %v190
    %v233 = vunpack.c.l.b16 %v191
    %v234 = vunpack.c.l.b16 %v192
    %v235 = vunpack.c.l.b16 %v193
    %v236 = vunpack.c.l.b16 %v194
    %v237 = vunpack.c.l.b16 %v195
    %v238 = vunpack.c.l.b16 %v196
    %v239 = vunpack.c.l.b16 %v197
    %v240 = vunpack.c.l.b16 %v198
    %v241 = vunpack.c.l.b16 %v199
    %v242 = vunpack.c.l.b16 %v200
    %v243 = vunpack.c.l.b16 %v201
    %v244 = vunpack.c.l.b16 %v202
    %v245 = vunpack.c.l.b16 %v203
    %v246 = vpack.c.b16 %v231, %v230
    %v247 = vpack.c.b16 %v233, %v232
    %v248 = vpack.c.b16 %v235, %v234
    %v249 = vpack.c.b16 %v237, %v236
    %v250 = vpack.c.b16 %v239, %v238
    %v251 = vpack.c.b16 %v241, %v240
    %v252 = vpack.c.b16 %v243, %v242
    %v253 = vpack.c.b16 %v245, %v244
    %262 = vmatpush.bf16.msra.mxu0 %v253
    %263 = vmatpush.bf16.msra.mxu0 %v252
    %264 = vmatpush.bf16.msra.mxu0 %v251
    %265 = vmatpush.bf16.msra.mxu0 %v250
    %266 = vmatpush.bf16.msra.mxu0 %v249
    %267 = vmatpush.bf16.msra.mxu0 %v248
    %268 = vmatpush.bf16.msra.mxu0 %v247
    %269 = vmatpush.bf16.msra.mxu0 %v246
    %270 = vmatmul.bf16.gmra.mxu0 %v212
    %v271 = vpop.f32.mrf.mxu0
    %v272 = vadd.f32 %v206, %v271
    %v273 = vpop.f32.mrf.mxu0
    %v274 = vadd.f32 %v206, %v273
    %275 = vdwg.mxu0
    %v276 = vmax.f32 %v272, 0.0
    %v277 = vmax.f32 %v274, 0.0
    %v278 = vpack.c.bf16 %v276, %v276
    %v279 = vpack.c.bf16 %v277, %v277
    %280 = vst [vmem:[#allocation2] sm:$0xf] %v278
    %281 = vst [vmem:[#allocation2 + $0x4] sm:$0xf] %v279
    %v282 = vld [vmem:[#allocation2] sm:$0xf]
    %v283 = vld [vmem:[#allocation2 + $0x4] sm:$0xf]
    %v284 = vld [vmem:[#allocation9] sm:$0xf]
    %v285 = vld [vmem:[#allocation9 + $0x4] sm:$0xf]
    %v286 = vld [vmem:[#allocation9 + $0x8] sm:$0xf]
    %v287 = vld [vmem:[#allocation9 + $0xc] sm:$0xf]
    %v288 = vld [vmem:[#allocation9 + $0x10] sm:$0xf]
    %v289 = vld [vmem:[#allocation9 + $0x14] sm:$0xf]
    %v290 = vld [vmem:[#allocation9 + $0x18] sm:$0xf]
    %v291 = vld [vmem:[#allocation9 + $0x1c] sm:$0xf]
    %v292 = vld [vmem:[#allocation9 + $0x20] sm:$0xf]
    %v293 = vld [vmem:[#allocation9 + $0x24] sm:$0xf]
    %v294 = vld [vmem:[#allocation9 + $0x28] sm:$0xf]
    %v295 = vld [vmem:[#allocation9 + $0x2c] sm:$0xf]
    %v296 = vld [vmem:[#allocation9 + $0x30] sm:$0xf]
    %v297 = vld [vmem:[#allocation9 + $0x34] sm:$0xf]
    %v298 = vld [vmem:[#allocation9 + $0x38] sm:$0xf]
    %v299 = vld [vmem:[#allocation9 + $0x3c] sm:$0xf]
    %v300 = vld [vmem:[%s6] sm:$0x1]
    %v302 = vperm.slane %v300, 0
    %v306 = vunpack.c.l.b16 %v282
    %v307 = vunpack.c.l.b16 %v283
    %v308 = vpack.c.b16 %v307, %v306
    %v326 = vunpack.c.l.b16 %v284
    %v327 = vunpack.c.l.b16 %v285
    %v328 = vunpack.c.l.b16 %v286
    %v329 = vunpack.c.l.b16 %v287
    %v330 = vunpack.c.l.b16 %v288
    %v331 = vunpack.c.l.b16 %v289
    %v332 = vunpack.c.l.b16 %v290
    %v333 = vunpack.c.l.b16 %v291
    %v334 = vunpack.c.l.b16 %v292
    %v335 = vunpack.c.l.b16 %v293
    %v336 = vunpack.c.l.b16 %v294
    %v337 = vunpack.c.l.b16 %v295
    %v338 = vunpack.c.l.b16 %v296
    %v339 = vunpack.c.l.b16 %v297
    %v340 = vunpack.c.l.b16 %v298
    %v341 = vunpack.c.l.b16 %v299
    %v342 = vpack.c.b16 %v327, %v326
    %v343 = vpack.c.b16 %v329, %v328
    %v344 = vpack.c.b16 %v331, %v330
    %v345 = vpack.c.b16 %v333, %v332
    %v346 = vpack.c.b16 %v335, %v334
    %v347 = vpack.c.b16 %v337, %v336
    %v348 = vpack.c.b16 %v339, %v338
    %v349 = vpack.c.b16 %v341, %v340
    %358 = vmatpush.bf16.msra.mxu0 %v349
    %359 = vmatpush.bf16.msra.mxu0 %v348
    %360 = vmatpush.bf16.msra.mxu0 %v347
    %361 = vmatpush.bf16.msra.mxu0 %v346
    %362 = vmatpush.bf16.msra.mxu0 %v345
    %363 = vmatpush.bf16.msra.mxu0 %v344
    %364 = vmatpush.bf16.msra.mxu0 %v343
    %365 = vmatpush.bf16.msra.mxu0 %v342
    %366 = vmatmul.bf16.gmra.mxu0 %v308
    %v367 = vpop.f32.mrf.mxu0
    %v368 = vadd.f32 %v302, %v367
    %v369 = vpop.f32.mrf.mxu0
    %v370 = vadd.f32 %v302, %v369
    %371 = vdwg.mxu0
    %372 = vst [vmem:[#allocation11] sm:$0xff] %v368
    %373 = vst [vmem:[#allocation11 + $0x8] sm:$0xff] %v370
    // Predicated region
    $region46: #{tpu_custom_call.1} parent=1 // pred_check
      _
    $region47: #{tpu_custom_call.1} parent=1 // pred_check_branch
      %375 = sbr.rel (0) target = $region49
    $region48: #{tpu_custom_call.1} parent=1 // pred_region
      %377 = vsyncadd [#allocation5], 0
      %s378 = sshll.u32 [#allocation11], 4
      %s379 = int_to_ptr.vmem [resolvable:$true] %s378
      %s380 = sshll.u32 %s7, 4
      %s381 = int_to_ptr.hbm [resolvable:$true] %s380
      %386 = dma.vmem_to_hbm [thread:$0]  %s379, 256, %s381, [#allocation5], 128, 128, 8
    $region49: #{tpu_custom_call.1} parent=1 // pred_fallthru
      _
    // Predicated region
    $region50: #{tpu_custom_call.1} parent=1 // pred_check
      _
    $region51: #{tpu_custom_call.1} parent=1 // pred_check_branch
      %388 = sbr.rel (0) target = $region53
    $region52: #{tpu_custom_call.1} parent=1 // pred_region
      %390 = dma.done [#allocation5], 256
    $region53: #{tpu_custom_call.1} parent=1 // pred_fallthru
      _
    %391 = vsyncpa [#allocation4], 1
    %392 = vsyncpa [#allocation7], 1
    %393 = vsyncpa [#allocation10], 1
    %394 = vsyncpa [#allocation5], 1

</llo_original>
